<compile_context>
chip_gen: v7x
topology: tpu7x:2x2x1
jax: 0.10.0
libtpu: 0.0.40
codegen_flags: <defaults>
</compile_context>

<pallas_src>
import functools

import jax
import jax.numpy as jnp
import numpy as np
from jax.experimental import pallas as pl
from jax.experimental.pallas import tpu as pltpu


def _topk_attention_kernel(q_ref, k_ref, v_ref, o_ref, *, topk, compute_dtype):
    # q_ref: (1, TQ, D)   k_ref/v_ref: (1, Sk, D)   o_ref: (1, TQ, D)
    q = q_ref[0].astype(compute_dtype)      # [TQ, D]
    kmat = k_ref[0].astype(compute_dtype)   # [Sk, D]
    v = v_ref[0].astype(compute_dtype)      # [Sk, D]

    # Attention scores Q @ K^T (contract over D), f32 accumulation on the MXU.
    s = jax.lax.dot_general(
        q, kmat, (((1,), (1,)), ((), ())),
        preferred_element_type=jnp.float32)                      # [TQ, Sk]

    tq, sk = s.shape
    col = jax.lax.broadcasted_iota(jnp.int32, (tq, sk), 1)       # key index
    neg_inf = jnp.float32(-jnp.inf)

    # Iterative top-k selection (topk is small & static -> unrolled).
    # Per iteration: one f32 row-max (XLU), one int row-min tie-break (XLU),
    # and ~4 full-tile VPU ops.  No weight accumulation / exp inside the loop.
    work = s
    m0 = None                                # global row max (iteration 0)
    for j in range(topk):
        row_max = jnp.max(work, axis=-1, keepdims=True)          # [TQ, 1]
        if j == 0:
            m0 = row_max
        is_max = work == row_max
        first_idx = jnp.min(jnp.where(is_max, col, sk),
                            axis=-1, keepdims=True)              # [TQ, 1]
        pick = col == first_idx                                  # one-hot row
        work = jnp.where(pick, neg_inf, work)

    # Selected entries are exactly the -inf entries of `work`.  One full-tile
    # exp (EUP slot) produces the unnormalized k-hot softmax weights; since
    # m0 is the row max, exp(s - m0) <= 1 and never overflows.
    w_unnorm = jnp.where(work == neg_inf, jnp.exp(s - m0), jnp.float32(0.0))
    denom = jnp.sum(w_unnorm, axis=-1, keepdims=True)            # [TQ, 1] f32

    # PV matmul on the MXU with f32 accumulation; normalize afterwards in f32
    # (exact reciprocal on a [TQ,1] tensor -> negligible), then cast to the
    # output dtype.  Deferring normalization past PV replaces a [TQ,Sk]
    # multiply with a [TQ,D] one and keeps it full-precision.
    pv = jnp.dot(w_unnorm.astype(compute_dtype), v,
                 preferred_element_type=jnp.float32)             # [TQ, D] f32
    o_ref[0] = (pv * (1.0 / denom)).astype(o_ref.dtype)


_NUM_SCORE_TEMPS = 6          # live f32 [TQ,Sk] temporaries (s, work, w, col, masks)
_VMEM_HEADROOM = 8 << 20      # leave room for Mosaic scratch / semaphores


def _vmem_capacity_bytes():
    """Physical VMEM of the current chip; conservative fallback (v7x)."""
    try:
        return int(pltpu.get_tpu_info().vmem_capacity_bytes)
    except Exception:
        return 64 << 20


def _pick_q_tile(sq, sk, d, in_isz, out_isz, vmem_cap):
    """Largest TPU-friendly tile dividing Sq whose VMEM estimate fits."""
    budget = max(vmem_cap - _VMEM_HEADROOM, 16 << 20)
    kv_resident = 2 * 2 * sk * d * in_isz               # K+V, double-buffered
    per_row = (_NUM_SCORE_TEMPS * sk * 4                 # f32 [TQ,Sk] temps
               + 2 * d * (in_isz + out_isz))             # Q/out double-buffered
    max_rows = max((budget - kv_resident) // per_row, 8)
    for cand in (512, 256, 128, 64, 32, 16, 8):
        if sq % cand == 0 and cand <= max_rows:
            return cand
    return sq                                            # tiny/odd Sq: one tile


def _vmem_limit_bytes(q_tile, sk, d, in_isz, out_isz, vmem_cap):
    io = (2 * q_tile * d * (in_isz + out_isz)            # Q + out (dbl-buffered)
          + 2 * 2 * sk * d * in_isz)                     # K + V (dbl-buffered)
    temps = _NUM_SCORE_TEMPS * q_tile * sk * 4
    est = io + temps + (4 << 20)
    cap = max(vmem_cap - _VMEM_HEADROOM, 16 << 20)
    return int(min(max(est, 32 << 20), cap))


def topk_attention(Q, K, V, k, *, compute_dtype=jnp.bfloat16, q_tile=None):
    """Pallas top-k attention.  Q:[B,Sq,D] K:[B,Sk,D] V:[B,Sk,D] -> [B,Sq,D].

    compute_dtype: dtype of the MXU operands (default bf16; accumulation and
    softmax normalization are always f32).  Output dtype follows Q.dtype.
    """
    B, Sq, D = Q.shape
    Bk, Sk, Dk = K.shape
    assert K.shape == V.shape and Bk == B and Dk == D, "Q/K/V shape mismatch"
    if k > Sk:
        raise ValueError(f"top-k k={k} must be <= Sk={Sk}")

    in_isz = jnp.dtype(Q.dtype).itemsize
    out_isz = jnp.dtype(Q.dtype).itemsize
    vmem_cap = _vmem_capacity_bytes()

    if q_tile is None:
        q_tile = _pick_q_tile(Sq, Sk, D, in_isz, out_isz, vmem_cap)
    if Sq % q_tile != 0:
        raise ValueError(f"q_tile={q_tile} must divide Sq={Sq}")
    num_q_tiles = Sq // q_tile

    kernel = functools.partial(
        _topk_attention_kernel, topk=k, compute_dtype=compute_dtype)

    vmem_limit = _vmem_limit_bytes(q_tile, Sk, D, in_isz, out_isz, vmem_cap)

    cost = pl.CostEstimate(
        flops=4 * B * Sq * Sk * D,          # QK^T + PV matmuls
        transcendentals=B * Sq * Sk,        # one full-tile exp per score
        bytes_accessed=(Q.size + K.size + V.size) * in_isz
                       + B * Sq * D * out_isz)

    return pl.pallas_call(
        kernel,
        out_shape=jax.ShapeDtypeStruct((B, Sq, D), Q.dtype),
        grid_spec=pltpu.PrefetchScalarGridSpec(
            num_scalar_prefetch=0,
            # Both axes parallel: lets v7x shard B x num_q_tiles over its 2 TCs.
            grid=(B, num_q_tiles),
            in_specs=[
                pl.BlockSpec((1, q_tile, D), lambda b, qi: (b, qi, 0)),
                pl.BlockSpec((1, Sk, D), lambda b, qi: (b, 0, 0)),   # K: const over qi
                pl.BlockSpec((1, Sk, D), lambda b, qi: (b, 0, 0)),   # V: const over qi
            ],
            out_specs=pl.BlockSpec((1, q_tile, D), lambda b, qi: (b, qi, 0)),
        ),
        compiler_params=pltpu.CompilerParams(
            dimension_semantics=("parallel", "parallel"),
            vmem_limit_bytes=vmem_limit),
        cost_estimate=cost,
    )(Q, K, V)


def _reference(Q, K, V, k, compute_dtype):
    """Pure-JAX reference of the intended top-k attention (f32 output)."""
    Qc = Q.astype(compute_dtype)
    Kc = K.astype(compute_dtype)
    Vc = V.astype(compute_dtype).astype(jnp.float32)
    # Same dot_general configuration as the kernel for identical selection.
    scores = jax.vmap(
        lambda q, kk: jax.lax.dot_general(
            q, kk, (((1,), (1,)), ((), ())),
            preferred_element_type=jnp.float32))(Qc, Kc)          # [B,Sq,Sk]
    top_vals, top_idx = jax.lax.top_k(scores, k)                  # [B,Sq,k]
    w = jax.nn.softmax(top_vals, axis=-1)                         # [B,Sq,k]
    gathered = jnp.take_along_axis(Vc[:, None, :, :],
                                   top_idx[..., None], axis=2)    # [B,Sq,k,D]
    return jnp.einsum("bqk,bqkd->bqd", w, gathered)


def _make_inputs(key, B, Sq, Sk, D, dtype):
    """Deterministic inputs whose values are bf16-representable, so kernel and
    reference see bit-identical scores regardless of MXU precision mode."""
    kq, kk, kv = jax.random.split(key, 3)
    def draw(k_, shape):
        x = jax.random.normal(k_, shape, jnp.float32)
        return x.astype(jnp.bfloat16).astype(dtype)
    return (draw(kq, (B, Sq, D)), draw(kk, (B, Sk, D)), draw(kv, (B, Sk, D)))


if __name__ == "__main__":
    # Case 1: f32 compute path, tiny generic shapes (single query tile).
    B, Sq, Sk, D, topk = 2, 8, 8, 32, 4
    Q, K, V = _make_inputs(jax.random.PRNGKey(0), B, Sq, Sk, D, jnp.float32)
    out = jax.block_until_ready(
        topk_attention(Q, K, V, topk, compute_dtype=jnp.float32))
    ref = _reference(Q, K, V, topk, jnp.float32)
    np.testing.assert_allclose(np.asarray(out), np.asarray(ref),
                               rtol=1e-2, atol=1e-2)

    # Case 2: bf16 fast path, lane-dense D=128, query-tiled Sq=512.
    B, Sq, Sk, D, topk = 2, 512, 128, 128, 8
    Qb, Kb, Vb = _make_inputs(jax.random.PRNGKey(0), B, Sq, Sk, D, jnp.bfloat16)
    outb = jax.block_until_ready(topk_attention(Qb, Kb, Vb, topk))  # bf16 compute/out
    refb = _reference(Qb, Kb, Vb, topk, jnp.bfloat16)
    np.testing.assert_allclose(np.asarray(outb.astype(jnp.float32)),
                               np.asarray(refb, np.float32),
                               rtol=3e-2, atol=3e-2)

    print("KERNEL_OK")
</pallas_src>

<mosaic_0001>
module attributes {stable_mosaic.version = 11 : i64} {
  func.func @_topk_attention_kernel(%arg0: i32, %arg1: i32, %arg2: memref<1x8x32xf32, #tpu.memory_space<vmem>>, %arg3: memref<1x8x32xf32, #tpu.memory_space<vmem>>, %arg4: memref<1x8x32xf32, #tpu.memory_space<vmem>>, %arg5: memref<1x8x32xf32, #tpu.memory_space<vmem>>) attributes {dimension_semantics = [#tpu.dimension_semantics<parallel>, #tpu.dimension_semantics<parallel>], iteration_bounds = array<i64: 2, 1>, scalar_prefetch = 0 : i64, scratch_operands = 0 : i64, tpu.core_type = #tpu.core_type<tc>, window_params = [{transform_indices = @transform_0, window_bounds = array<i64: 1, 8, 32>}, {transform_indices = @transform_1, window_bounds = array<i64: 1, 8, 32>}, {transform_indices = @transform_2, window_bounds = array<i64: 1, 8, 32>}, {transform_indices = @transform_3, window_bounds = array<i64: 1, 8, 32>}]} {
    %c0 = arith.constant 0 : index
    %c0_0 = arith.constant 0 : index
    %c0_1 = arith.constant 0 : index
    %0 = vector.load %arg2[%c0, %c0_0, %c0_1] : memref<1x8x32xf32, #tpu.memory_space<vmem>>, vector<1x8x32xf32>
    %1 = vector.shape_cast %0 : vector<1x8x32xf32> to vector<8x32xf32>
    %c0_2 = arith.constant 0 : index
    %c0_3 = arith.constant 0 : index
    %c0_4 = arith.constant 0 : index
    %2 = vector.load %arg3[%c0_2, %c0_3, %c0_4] : memref<1x8x32xf32, #tpu.memory_space<vmem>>, vector<1x8x32xf32>
    %3 = vector.shape_cast %2 : vector<1x8x32xf32> to vector<8x32xf32>
    %c0_5 = arith.constant 0 : index
    %c0_6 = arith.constant 0 : index
    %c0_7 = arith.constant 0 : index
    %4 = vector.load %arg4[%c0_5, %c0_6, %c0_7] : memref<1x8x32xf32, #tpu.memory_space<vmem>>, vector<1x8x32xf32>
    %5 = vector.shape_cast %4 : vector<1x8x32xf32> to vector<8x32xf32>
    %cst = arith.constant dense<0.000000e+00> : vector<8x8xf32>
    %6 = tpu.matmul %1, %3, %cst {dimension_numbers = #tpu.dot_dimension_numbers<[1], [1], [0], [0], [0, 0, 1, 0], [], []>} : vector<8x32xf32>, vector<8x32xf32>, vector<8x8xf32> -> vector<8x8xf32>
    %7 = tpu.iota {dimensions = array<i32: 1>} : vector<8x8xi32>
    %cst_8 = arith.constant dense<0xFF800000> : vector<8xf32>
    %8 = vector.multi_reduction <maximumf>, %6, %cst_8 [1] : vector<8x8xf32> to vector<8xf32>
    %9 = vector.shape_cast %8 : vector<8xf32> to vector<8x1xf32>
    %10 = vector.broadcast %9 : vector<8x1xf32> to vector<8x8xf32>
    %11 = arith.cmpf oeq, %6, %10 : vector<8x8xf32>
    %c8_i32 = arith.constant 8 : i32
    %12 = vector.broadcast %c8_i32 : i32 to vector<8x8xi32>
    %13 = arith.select %11, %7, %12 : vector<8x8xi1>, vector<8x8xi32>
    %cst_9 = arith.constant dense<2147483647> : vector<8xi32>
    %14 = vector.multi_reduction <minsi>, %13, %cst_9 [1] : vector<8x8xi32> to vector<8xi32>
    %15 = vector.shape_cast %14 : vector<8xi32> to vector<8x1xi32>
    %16 = vector.broadcast %15 : vector<8x1xi32> to vector<8x8xi32>
    %17 = arith.cmpi eq, %7, %16 : vector<8x8xi32>
    %cst_10 = arith.constant 0xFF800000 : f32
    %18 = vector.broadcast %cst_10 : f32 to vector<8x8xf32>
    %19 = arith.select %17, %18, %6 : vector<8x8xi1>, vector<8x8xf32>
    %cst_11 = arith.constant dense<0xFF800000> : vector<8xf32>
    %20 = vector.multi_reduction <maximumf>, %19, %cst_11 [1] : vector<8x8xf32> to vector<8xf32>
    %21 = vector.shape_cast %20 : vector<8xf32> to vector<8x1xf32>
    %22 = vector.broadcast %21 : vector<8x1xf32> to vector<8x8xf32>
    %23 = arith.cmpf oeq, %19, %22 : vector<8x8xf32>
    %c8_i32_12 = arith.constant 8 : i32
    %24 = vector.broadcast %c8_i32_12 : i32 to vector<8x8xi32>
    %25 = arith.select %23, %7, %24 : vector<8x8xi1>, vector<8x8xi32>
    %cst_13 = arith.constant dense<2147483647> : vector<8xi32>
    %26 = vector.multi_reduction <minsi>, %25, %cst_13 [1] : vector<8x8xi32> to vector<8xi32>
    %27 = vector.shape_cast %26 : vector<8xi32> to vector<8x1xi32>
    %28 = vector.broadcast %27 : vector<8x1xi32> to vector<8x8xi32>
    %29 = arith.cmpi eq, %7, %28 : vector<8x8xi32>
    %cst_14 = arith.constant 0xFF800000 : f32
    %30 = vector.broadcast %cst_14 : f32 to vector<8x8xf32>
    %31 = arith.select %29, %30, %19 : vector<8x8xi1>, vector<8x8xf32>
    %cst_15 = arith.constant dense<0xFF800000> : vector<8xf32>
    %32 = vector.multi_reduction <maximumf>, %31, %cst_15 [1] : vector<8x8xf32> to vector<8xf32>
    %33 = vector.shape_cast %32 : vector<8xf32> to vector<8x1xf32>
    %34 = vector.broadcast %33 : vector<8x1xf32> to vector<8x8xf32>
    %35 = arith.cmpf oeq, %31, %34 : vector<8x8xf32>
    %c8_i32_16 = arith.constant 8 : i32
    %36 = vector.broadcast %c8_i32_16 : i32 to vector<8x8xi32>
    %37 = arith.select %35, %7, %36 : vector<8x8xi1>, vector<8x8xi32>
    %cst_17 = arith.constant dense<2147483647> : vector<8xi32>
    %38 = vector.multi_reduction <minsi>, %37, %cst_17 [1] : vector<8x8xi32> to vector<8xi32>
    %39 = vector.shape_cast %38 : vector<8xi32> to vector<8x1xi32>
    %40 = vector.broadcast %39 : vector<8x1xi32> to vector<8x8xi32>
    %41 = arith.cmpi eq, %7, %40 : vector<8x8xi32>
    %cst_18 = arith.constant 0xFF800000 : f32
    %42 = vector.broadcast %cst_18 : f32 to vector<8x8xf32>
    %43 = arith.select %41, %42, %31 : vector<8x8xi1>, vector<8x8xf32>
    %cst_19 = arith.constant dense<0xFF800000> : vector<8xf32>
    %44 = vector.multi_reduction <maximumf>, %43, %cst_19 [1] : vector<8x8xf32> to vector<8xf32>
    %45 = vector.shape_cast %44 : vector<8xf32> to vector<8x1xf32>
    %46 = vector.broadcast %45 : vector<8x1xf32> to vector<8x8xf32>
    %47 = arith.cmpf oeq, %43, %46 : vector<8x8xf32>
    %c8_i32_20 = arith.constant 8 : i32
    %48 = vector.broadcast %c8_i32_20 : i32 to vector<8x8xi32>
    %49 = arith.select %47, %7, %48 : vector<8x8xi1>, vector<8x8xi32>
    %cst_21 = arith.constant dense<2147483647> : vector<8xi32>
    %50 = vector.multi_reduction <minsi>, %49, %cst_21 [1] : vector<8x8xi32> to vector<8xi32>
    %51 = vector.shape_cast %50 : vector<8xi32> to vector<8x1xi32>
    %52 = vector.broadcast %51 : vector<8x1xi32> to vector<8x8xi32>
    %53 = arith.cmpi eq, %7, %52 : vector<8x8xi32>
    %cst_22 = arith.constant 0xFF800000 : f32
    %54 = vector.broadcast %cst_22 : f32 to vector<8x8xf32>
    %55 = arith.select %53, %54, %43 : vector<8x8xi1>, vector<8x8xf32>
    %cst_23 = arith.constant 0xFF800000 : f32
    %56 = vector.broadcast %cst_23 : f32 to vector<8x8xf32>
    %57 = arith.cmpf oeq, %55, %56 : vector<8x8xf32>
    %58 = vector.broadcast %9 : vector<8x1xf32> to vector<8x8xf32>
    %59 = arith.subf %6, %58 : vector<8x8xf32>
    %60 = math.exp %59 : vector<8x8xf32>
    %cst_24 = arith.constant 0.000000e+00 : f32
    %61 = vector.broadcast %cst_24 : f32 to vector<8x8xf32>
    %62 = arith.select %57, %60, %61 : vector<8x8xi1>, vector<8x8xf32>
    %cst_25 = arith.constant dense<0.000000e+00> : vector<8xf32>
    %63 = vector.multi_reduction <add>, %62, %cst_25 [1] : vector<8x8xf32> to vector<8xf32>
    %64 = vector.shape_cast %63 : vector<8xf32> to vector<8x1xf32>
    %cst_26 = arith.constant dense<0.000000e+00> : vector<8x32xf32>
    %65 = tpu.matmul %62, %5, %cst_26 {dimension_numbers = #tpu.dot_dimension_numbers<[1], [0], [0], [1], [0, 0, 1, 1], [], []>} : vector<8x8xf32>, vector<8x32xf32>, vector<8x32xf32> -> vector<8x32xf32>
    %cst_27 = arith.constant 1.000000e+00 : f32
    %66 = vector.broadcast %cst_27 : f32 to vector<8x1xf32>
    %67 = arith.divf %66, %64 : vector<8x1xf32>
    %68 = vector.broadcast %67 : vector<8x1xf32> to vector<8x32xf32>
    %69 = arith.mulf %65, %68 : vector<8x32xf32>
    %c0_28 = arith.constant 0 : index
    %c0_29 = arith.constant 0 : index
    %c0_30 = arith.constant 0 : index
    %70 = vector.load %arg5[%c0_28, %c0_29, %c0_30] : memref<1x8x32xf32, #tpu.memory_space<vmem>>, vector<1x8x32xf32>
    %71 = vector.shape_cast %70 : vector<1x8x32xf32> to vector<8x32xf32>
    %72 = vector.shape_cast %69 : vector<8x32xf32> to vector<1x8x32xf32>
    tpu.vector_store %arg5[%c0_28, %c0_29, %c0_30], %72 {strides = array<i32>} : memref<1x8x32xf32, #tpu.memory_space<vmem>>, vector<1x8x32xf32>,
    return
  }
  func.func @transform_0(%arg0: i32, %arg1: i32) -> (i32, i32, i32) {
    %c0_i32 = arith.constant 0 : i32
    %c0_i32_0 = arith.constant 0 : i32
    return %arg0, %arg1, %c0_i32 : i32, i32, i32
  }
  func.func @transform_1(%arg0: i32, %arg1: i32) -> (i32, i32, i32) {
    %c0_i32 = arith.constant 0 : i32
    %c0_i32_0 = arith.constant 0 : i32
    %c0_i32_1 = arith.constant 0 : i32
    return %arg0, %c0_i32, %c0_i32_0 : i32, i32, i32
  }
  func.func @transform_2(%arg0: i32, %arg1: i32) -> (i32, i32, i32) {
    %c0_i32 = arith.constant 0 : i32
    %c0_i32_0 = arith.constant 0 : i32
    %c0_i32_1 = arith.constant 0 : i32
    return %arg0, %c0_i32, %c0_i32_0 : i32, i32, i32
  }
  func.func @transform_3(%arg0: i32, %arg1: i32) -> (i32, i32, i32) {
    %c0_i32 = arith.constant 0 : i32
    %c0_i32_0 = arith.constant 0 : i32
    return %arg0, %arg1, %c0_i32 : i32, i32, i32
  }
}

</mosaic_0001>

<llo_original>
// kernel: tpu_custom_call.1
$region0: #{tpu_custom_call.1}
  #allocation0 [shape = 'u32[]', space=smem, size = 0x4, offset = 0x4, fixed_abs, tag = 'smem constant byte address 0x4 - core index']
  #allocation1 [shape = 'u32[144,128]{1,0:T(1,128)}', space=vmem, size = 0x12000, scoped, tag = 'internal scratch']
  %s0 = inlined_call_operand.hbm [shape: f32[2,8,32], index: 0, kind: input, shape index: {}]
  %s1 = inlined_call_operand.hbm [shape: f32[2,8,32], index: 1, kind: input, shape index: {}]
  %s2 = inlined_call_operand.hbm [shape: f32[2,8,32], index: 2, kind: input, shape index: {}]
  %s3 = inlined_call_operand.hbm [shape: f32[2,8,32], index: 3, kind: output, shape index: {}]
  %s4 = sld [smem:[#allocation0]]
  $region57: #{tpu_custom_call.1} parent=0
    _
  %s6 = ssub.s32 1, %s4
  %s7 = scalar_select 0, %s6, %s4
  $region1: #{tpu_custom_call.1} parent=0
    #allocation2 [shape = 'u8[8192]{0}', space=vmem, size = 0x2000, scoped, tag = 'input window, operand 0']
    #allocation3 [shape = 's32[2]{0}', space=sflag, size = 0x8, scoped, tag = 'scoped memory for tpu_custom_call.1']
    #allocation4 [shape = 's32[2]{0}', space=sflag, size = 0x8, scoped, tag = 'scoped memory for tpu_custom_call.1']
    #allocation5 [shape = 'u8[8192]{0}', space=vmem, size = 0x2000, scoped, tag = 'input window, operand 1']
    #allocation6 [shape = 's32[2]{0}', space=sflag, size = 0x8, scoped, tag = 'scoped memory for tpu_custom_call.1']
    #allocation7 [shape = 'u8[8192]{0}', space=vmem, size = 0x2000, scoped, tag = 'input window, operand 2']
    #allocation8 [shape = 'u8[8192]{0}', space=vmem, size = 0x2000, scoped, tag = 'output window, operand 0']
    %8 = vsyncpa [#allocation3], 0
    %s9 = scalar_lea.sflag [#allocation3], 1
    %10 = vsyncpa %s9, 0
    %11 = vsyncpa [#allocation6], 0
    %s12 = scalar_lea.sflag [#allocation6], 1
    %13 = vsyncpa %s12, 0
    %14 = vsyncpa [#allocation4], 0
    %s15 = scalar_lea.sflag [#allocation4], 1
    %16 = vsyncpa %s15, 0
    loop: start=0, step=1, limit=4
    $region2: #{tpu_custom_call.1} parent=1 // loop_pre_header
      _
    $region3: #{tpu_custom_call.1} parent=1 // loop_header
      %s18 = sphi 0, %s22
      %p19 = scmp.ge.s32.totalorder %s18, 4
      %s25 = sphi 0, %s37
      %s26 = sphi 0, %s33
      %s27 = sphi 0, %s25
      %s28 = sphi 0, %s26
      %s29 = sphi 0, %s27
      %s30 = sphi 0, %s28
      %s42 = sphi 0, %s44
      %s45 = sphi 0, %s42
      %s46 = sphi 0, %s45
      %s62 = sphi 0, %s46
      %s68 = sphi 0, %s70
      %s71 = sphi 0, %s68
      %s72 = sphi 0, %s71
      %s88 = sphi 0, %s72
      %s94 = sphi 0, %s96
      %s97 = sphi 0, %s94
      %s98 = sphi 0, %s97
      %s114 = sphi 0, %s98
      %s122 = sphi 0, %s124
      %s125 = sphi 0, %s122
      %s126 = sphi 0, %s125
      %s142 = sphi 0, %s126
    $region4: #{tpu_custom_call.1} parent=1 // loop_header_branch
      %21 = sbr.rel (%p19) target = $region8
    $region5: #{tpu_custom_call.1} parent=1 // loop_body
      %s23 = ssub.s32 %s18, 1
      %s24 = ssub.s32 %s18, 2
      %s31 = sadd.s32 1, %s26
      %p32 = scmp.ge.s32.totalorder %s31, 1
      %s33 = scalar_select %p32, 0, %s31
      %s34 = sadd.s32 1, %s25
      %s35 = scalar_select %p32, %s34, %s25
      %p36 = scmp.ge.s32.totalorder %s35, 2
      %s37 = scalar_select %p36, 0, %s35
      %s38 = ssub.s32 %s25, %s37
      %s39 = ssub.s32 %s26, %s33
      %s40 = sor.u32 %s38, %s39
      %p41 = scmp.eq.s32.totalorder %s40, 0
      %s43 = sadd.s32 %s42, 1
      %s44 = scalar_select %p41, %s42, %s43
      %p47 = pneg %p41
      %p48 = scmp.eq.s32.totalorder %s18, 1
      %p49 = por %p47, %p48
      %p50 = scmp.ne.s32.totalorder %s42, %s45
      %p51 = scmp.eq.s32.totalorder %s18, 0
      %p52 = por %p50, %p51
      %p53 = scmp.ne.s32.totalorder %s42, %s45
      %p54 = scmp.eq.s32.totalorder %s23, 1
      %p55 = por %p53, %p54
      %p56 = scmp.ne.s32.totalorder %s45, %s46
      %p57 = scmp.eq.s32.totalorder %s23, 0
      %p58 = por %p56, %p57
      %p59 = scmp.ne.s32.totalorder %s45, %s46
      %p60 = scmp.eq.s32.totalorder %s24, 1
      %p61 = por %p59, %p60
      %p63 = scmp.ne.s32.totalorder %s46, %s62
      %p64 = scmp.eq.s32.totalorder %s24, 0
      %p65 = por %p63, %p64
      %s66 = ssub.s32 %s25, %s37
      %p67 = scmp.eq.s32.totalorder %s66, 0
      %s69 = sadd.s32 %s68, 1
      %s70 = scalar_select %p67, %s68, %s69
      %p73 = pneg %p67
      %p74 = scmp.eq.s32.totalorder %s18, 1
      %p75 = por %p73, %p74
      %p76 = scmp.ne.s32.totalorder %s68, %s71
      %p77 = scmp.eq.s32.totalorder %s18, 0
      %p78 = por %p76, %p77
      %p79 = scmp.ne.s32.totalorder %s68, %s71
      %p80 = scmp.eq.s32.totalorder %s23, 1
      %p81 = por %p79, %p80
      %p82 = scmp.ne.s32.totalorder %s71, %s72
      %p83 = scmp.eq.s32.totalorder %s23, 0
      %p84 = por %p82, %p83
      %p85 = scmp.ne.s32.totalorder %s71, %s72
      %p86 = scmp.eq.s32.totalorder %s24, 1
      %p87 = por %p85, %p86
      %p89 = scmp.ne.s32.totalorder %s72, %s88
      %p90 = scmp.eq.s32.totalorder %s24, 0
      %p91 = por %p89, %p90
      %s92 = ssub.s32 %s25, %s37
      %p93 = scmp.eq.s32.totalorder %s92, 0
      %s95 = sadd.s32 %s94, 1
      %s96 = scalar_select %p93, %s94, %s95
      %p99 = pneg %p93
      %p100 = scmp.eq.s32.totalorder %s18, 1
      %p101 = por %p99, %p100
      %p102 = scmp.ne.s32.totalorder %s94, %s97
      %p103 = scmp.eq.s32.totalorder %s18, 0
      %p104 = por %p102, %p103
      %p105 = scmp.ne.s32.totalorder %s94, %s97
      %p106 = scmp.eq.s32.totalorder %s23, 1
      %p107 = por %p105, %p106
      %p108 = scmp.ne.s32.totalorder %s97, %s98
      %p109 = scmp.eq.s32.totalorder %s23, 0
      %p110 = por %p108, %p109
      %p111 = scmp.ne.s32.totalorder %s97, %s98
      %p112 = scmp.eq.s32.totalorder %s24, 1
      %p113 = por %p111, %p112
      %p115 = scmp.ne.s32.totalorder %s98, %s114
      %p116 = scmp.eq.s32.totalorder %s24, 0
      %p117 = por %p115, %p116
      %s118 = ssub.s32 %s25, %s37
      %s119 = ssub.s32 %s26, %s33
      %s120 = sor.u32 %s118, %s119
      %p121 = scmp.eq.s32.totalorder %s120, 0
      %s123 = sadd.s32 %s122, 1
      %s124 = scalar_select %p121, %s122, %s123
      %p127 = pneg %p121
      %p128 = scmp.eq.s32.totalorder %s18, 1
      %p129 = por %p127, %p128
      %p130 = scmp.ne.s32.totalorder %s122, %s125
      %p131 = scmp.eq.s32.totalorder %s18, 0
      %p132 = por %p130, %p131
      %p133 = scmp.ne.s32.totalorder %s122, %s125
      %p134 = scmp.eq.s32.totalorder %s23, 1
      %p135 = por %p133, %p134
      %p136 = scmp.ne.s32.totalorder %s125, %s126
      %p137 = scmp.eq.s32.totalorder %s23, 0
      %p138 = por %p136, %p137
      %p139 = scmp.ne.s32.totalorder %s125, %s126
      %p140 = scmp.eq.s32.totalorder %s24, 1
      %p141 = por %p139, %p140
      %p143 = scmp.ne.s32.totalorder %s126, %s142
      %p144 = scmp.eq.s32.totalorder %s24, 0
      %p145 = por %p143, %p144
      %p146 = scmp.le.s32.totalorder 1, %s18
      %p147 = scmp.lt.s32.totalorder %s18, 3
      %p148 = pnand %p146, %p147
      %p149 = pneg %p148
      // Predicated region
      $region9: #{tpu_custom_call.1} parent=5 // pred_check
        _
      $region10: #{tpu_custom_call.1} parent=5 // pred_check_branch
        %151 = sbr.rel (%p148) target = $region12
      $region11: #{tpu_custom_call.1} parent=5 // pred_region
        %s152 = ssub.s32 %s18, 1
      $region12: #{tpu_custom_call.1} parent=5 // pred_fallthru
        _
      %p153 = scmp.lt.s32.totalorder %s18, 2
      // Predicated region
      $region13: #{tpu_custom_call.1} parent=5 // pred_check
        %p154 = pneg %p153
      $region14: #{tpu_custom_call.1} parent=5 // pred_check_branch
        %156 = sbr.rel (%p154) target = $region16
      $region15: #{tpu_custom_call.1} parent=5 // pred_region
        // Predicated region
        $region17: #{tpu_custom_call.1} parent=15 // pred_check
          %p157 = pneg %p52
        $region18: #{tpu_custom_call.1} parent=15 // pred_check_branch
          %159 = sbr.rel (%p157) target = $region20
        $region19: #{tpu_custom_call.1} parent=15 // pred_region
          %s160 = sand.u32 %s42, 1
          %s161 = scalar_lea.sflag [#allocation3], %s160
          %s162 = sand.u32 %s42, 1
          %s163 = smul.addr %s162, 8
          %s164 = scalar_lea.vmem [#allocation2], %s163
          %s166 = ssub.s32 128, 128
          %167 = vsyncadd %s161, %s166
          %s168 = sadd.s32 %s26, %s25
          %s169 = smul.addr %s168, 128
          %s170 = scalar_lea.hbm %s0, %s169
          %s172 = sshll.u32 %s164, 4
          %s173 = int_to_ptr.vmem [resolvable:$true] %s172
          %175 = dma.hbm_to_vmem [thread:$0]  %s170, 128, %s173, %s161
        $region20: #{tpu_custom_call.1} parent=15 // pred_fallthru
          _
        // Predicated region
        $region21: #{tpu_custom_call.1} parent=15 // pred_check
          %p176 = pneg %p78
        $region22: #{tpu_custom_call.1} parent=15 // pred_check_branch
          %178 = sbr.rel (%p176) target = $region24
        $region23: #{tpu_custom_call.1} parent=15 // pred_region
          %s179 = sand.u32 %s18, 1
          %s180 = scalar_lea.sflag [#allocation6], %s179
          %s181 = sand.u32 %s68, 1
          %s182 = smul.addr %s181, 8
          %s183 = scalar_lea.vmem [#allocation5], %s182
          %s185 = ssub.s32 128, 128
          %186 = vsyncadd %s180, %s185
          %s187 = smul.addr %s25, 128
          %s188 = scalar_lea.hbm %s1, %s187
          %s190 = sshll.u32 %s183, 4
          %s191 = int_to_ptr.vmem [resolvable:$true] %s190
          %193 = dma.hbm_to_vmem [thread:$0]  %s188, 128, %s191, %s180
        $region24: #{tpu_custom_call.1} parent=15 // pred_fallthru
          _
        // Predicated region
        $region25: #{tpu_custom_call.1} parent=15 // pred_check
          %p194 = pneg %p104
        $region26: #{tpu_custom_call.1} parent=15 // pred_check_branch
          %196 = sbr.rel (%p194) target = $region28
        $region27: #{tpu_custom_call.1} parent=15 // pred_region
          %s197 = sand.u32 %s18, 1
          %s198 = scalar_lea.sflag [#allocation6], %s197
          %s199 = sand.u32 %s94, 1
          %s200 = smul.addr %s199, 8
          %s201 = scalar_lea.vmem [#allocation7], %s200
          %s203 = ssub.s32 128, 128
          %204 = vsyncadd %s198, %s203
          %s205 = smul.addr %s25, 128
          %s206 = scalar_lea.hbm %s2, %s205
          %s208 = sshll.u32 %s201, 4
          %s209 = int_to_ptr.vmem [resolvable:$true] %s208
          %211 = dma.hbm_to_vmem [thread:$0]  %s206, 128, %s209, %s198
        $region28: #{tpu_custom_call.1} parent=15 // pred_fallthru
          _
      $region16: #{tpu_custom_call.1} parent=5 // pred_fallthru
        _
      %p212 = scmp.le.s32.totalorder 1, %s18
      %p213 = scmp.lt.s32.totalorder %s18, 3
      %p214 = pnand %p212, %p213
      %p215 = pneg %p214
      // Predicated region
      $region29: #{tpu_custom_call.1} parent=5 // pred_check
        _
      $region30: #{tpu_custom_call.1} parent=5 // pred_check_branch
        %217 = sbr.rel (%p214) target = $region32
      $region31: #{tpu_custom_call.1} parent=5 // pred_region
        %s218 = ssub.s32 %s18, 1
        %s219 = sand.u32 %s45, 1
        %s220 = scalar_lea.sflag [#allocation3], %s219
        %s221 = sand.u32 %s45, 1
        %s222 = smul.addr %s221, 8
        %s223 = scalar_lea.vmem [#allocation2], %s222
        // Predicated region
        $region33: #{tpu_custom_call.1} parent=31 // pred_check
          %p224 = pneg %p58
        $region34: #{tpu_custom_call.1} parent=31 // pred_check_branch
          %226 = sbr.rel (%p224) target = $region36
        $region35: #{tpu_custom_call.1} parent=31 // pred_region
          %227 = dma.done %s220, 128
        $region36: #{tpu_custom_call.1} parent=31 // pred_fallthru
          _
        %s228 = sand.u32 %s23, 1
        %s229 = scalar_lea.sflag [#allocation6], %s228
        %s230 = sand.u32 %s71, 1
        %s231 = smul.addr %s230, 8
        %s232 = scalar_lea.vmem [#allocation5], %s231
        // Predicated region
        $region37: #{tpu_custom_call.1} parent=31 // pred_check
          %p233 = pneg %p84
        $region38: #{tpu_custom_call.1} parent=31 // pred_check_branch
          %235 = sbr.rel (%p233) target = $region40
        $region39: #{tpu_custom_call.1} parent=31 // pred_region
          %236 = dma.done %s229, 128
        $region40: #{tpu_custom_call.1} parent=31 // pred_fallthru
          _
        %s237 = sand.u32 %s23, 1
        %s238 = scalar_lea.sflag [#allocation6], %s237
        %s239 = sand.u32 %s97, 1
        %s240 = smul.addr %s239, 8
        %s241 = scalar_lea.vmem [#allocation7], %s240
        // Predicated region
        $region41: #{tpu_custom_call.1} parent=31 // pred_check
          %p242 = pneg %p110
        $region42: #{tpu_custom_call.1} parent=31 // pred_check_branch
          %244 = sbr.rel (%p242) target = $region44
        $region43: #{tpu_custom_call.1} parent=31 // pred_region
          %245 = dma.done %s238, 128
        $region44: #{tpu_custom_call.1} parent=31 // pred_fallthru
          _
        %s246 = sand.u32 %s45, 1
        %s247 = scalar_lea.sflag [#allocation3], %s246
        %s248 = sand.u32 %s45, 1
        %s249 = smul.addr %s248, 8
        %s250 = scalar_lea.vmem [#allocation2], %s249
        %p251 = pneg %p58
        %p252 = pneg %p55
        %s253 = sand.u32 %s23, 1
        %s254 = scalar_lea.sflag [#allocation6], %s253
        %s255 = sand.u32 %s71, 1
        %s256 = smul.addr %s255, 8
        %s257 = scalar_lea.vmem [#allocation5], %s256
        %p258 = pneg %p84
        %p259 = pneg %p81
        %s260 = sand.u32 %s23, 1
        %s261 = scalar_lea.sflag [#allocation6], %s260
        %s262 = sand.u32 %s97, 1
        %s263 = smul.addr %s262, 8
        %s264 = scalar_lea.vmem [#allocation7], %s263
        %p265 = pneg %p110
        %p266 = pneg %p107
        %p267 = pneg %p138
        %p268 = pneg %p135
        %s269 = sand.u32 %s125, 1
        %s270 = scalar_lea.sflag [#allocation4], %s269
        %s271 = sand.u32 %s125, 1
        %s272 = smul.addr %s271, 8
        %s273 = scalar_lea.vmem [#allocation8], %s272
        %v274 = vld [vmem:[%s223] sm:$0xff]
        %v275 = vld [vmem:[%s232] sm:$0xff]
        %v276 = vld [vmem:[%s241] sm:$0xff]
        %vm277 = vcmask 261120
        %v279 = vsel %vm277, %v274, 0
        %v282 = vsel %vm277, %v275, 0
        %284 = vmatprep.subr.mxu0 0.0
        %285 = vmatpush1.xpose.msra.mxu0 %v282
        %286 = vmatprep.subr.mxu0 0.0
        %287 = vmatpush1.xpose.msra.mxu0 0.0
        %288 = vmatprep.subr.mxu0 0.0
        %289 = vmatpush1.xpose.msra.mxu0 0.0
        %290 = vmatprep.subr.mxu0 0.0
        %291 = vmatpush1.xpose.msra.mxu0 0.0
        %292 = vmatprep.subr.mxu0 0.0
        %293 = vmatpush1.xpose.msra.mxu0 0.0
        %294 = vmatprep.subr.mxu0 0.0
        %295 = vmatpush1.xpose.msra.mxu0 0.0
        %296 = vmatprep.subr.mxu0 0.0
        %297 = vmatpush1.xpose.msra.mxu0 0.0
        %298 = vmatprep.subr.mxu0 0.0
        %299 = vmatpush1.xpose.msra.mxu0 0.0
        %300 = vmatprep.subr.mxu0 0.0
        %301 = vmatpush1.xpose.msra.mxu0 0.0
        %302 = vmatprep.subr.mxu0 0.0
        %303 = vmatpush1.xpose.msra.mxu0 0.0
        %304 = vmatprep.subr.mxu0 0.0
        %305 = vmatpush1.xpose.msra.mxu0 0.0
        %306 = vmatprep.subr.mxu0 0.0
        %307 = vmatpush1.xpose.msra.mxu0 0.0
        %308 = vmatprep.subr.mxu0 0.0
        %309 = vmatpush1.xpose.msra.mxu0 0.0
        %310 = vmatprep.subr.mxu0 0.0
        %311 = vmatpush1.xpose.msra.mxu0 0.0
        %312 = vmatprep.subr.mxu0 0.0
        %313 = vmatpush1.xpose.msra.mxu0 0.0
        %314 = vmatprep.subr.mxu0 0.0
        %315 = vmatpush1.xpose.msra.mxu0 0.0
        %316 = vmatprep.subr.mxu0 0.0
        %317 = vmatpush1.xpose.msra.mxu0 0.0
        %318 = vmatprep.subr.mxu0 0.0
        %319 = vmatpush1.xpose.msra.mxu0 0.0
        %320 = vmatprep.subr.mxu0 0.0
        %321 = vmatpush1.xpose.msra.mxu0 0.0
        %322 = vmatprep.subr.mxu0 0.0
        %323 = vmatpush1.xpose.msra.mxu0 0.0
        %324 = vmatprep.subr.mxu0 0.0
        %325 = vmatpush1.xpose.msra.mxu0 0.0
        %326 = vmatprep.subr.mxu0 0.0
        %327 = vmatpush1.xpose.msra.mxu0 0.0
        %328 = vmatprep.subr.mxu0 0.0
        %329 = vmatpush1.xpose.msra.mxu0 0.0
        %330 = vmatprep.subr.mxu0 0.0
        %331 = vmatpush1.xpose.msra.mxu0 0.0
        %332 = vmatprep.subr.mxu0 0.0
        %333 = vmatpush1.xpose.msra.mxu0 0.0
        %334 = vmatprep.subr.mxu0 0.0
        %335 = vmatpush1.xpose.msra.mxu0 0.0
        %336 = vmatprep.subr.mxu0 0.0
        %337 = vmatpush1.xpose.msra.mxu0 0.0
        %338 = vmatprep.subr.mxu0 0.0
        %339 = vmatpush1.xpose.msra.mxu0 0.0
        %340 = vmatprep.subr.mxu0 0.0
        %341 = vmatpush1.xpose.msra.mxu0 0.0
        %342 = vmatprep.subr.mxu0 0.0
        %343 = vmatpush1.xpose.msra.mxu0 0.0
        %344 = vmatprep.subr.mxu0 0.0
        %345 = vmatpush1.xpose.msra.mxu0 0.0
        %346 = vmatprep.subr.mxu0 0.0
        %347 = vmatpush1.xpose.msra.mxu0 0.0
        %348 = vmatprep.mubr.f32.mxu0 0.0
        %349 = vmatmul.mubr.f32.gmra.mrb[0].mxu0 %v279
        %v350 = vpop.f32.mrb[0].mxu0
        %v351 = vadd.f32 0.0, %v350
        %v352 = vpop.f32.mrb[0].mxu0
        %353 = vdwg.mxu0
        %v354 = vlaneseq
        %v355 = vand.u32 %v354, 127
        %vm356 = vcmask 64512
        %v357 = vsel %vm356, %v351, -inf
        %358 = vmax.xlane.f32.xlu0 %v357
        %v359 = vpop.xlane.xlu0 %358
        %vm360 = vcmp.eq.f32.partialorder %v351, %v359
        %v361 = vsel %vm360, %v355, 8
        %v362 = vsel %vm356, %v361, 2147483647
        %v363 = vand.u32 %v362, 65535
        %v364 = vshra.s32 %v362, 16
        %v365 = vcvt.s32.f32 %v363
        %v366 = vcvt.s32.f32 %v364
        %367 = vmin.xlane.f32.xlu0 %v366
        %v368 = vpop.xlane.xlu0 %367
        %vm369 = vcmp.eq.f32.partialorder %v366, %v368
        %v370 = vsel %vm369, %v365, inf
        %371 = vmin.xlane.f32.xlu0 %v370
        %v372 = vpop.xlane.xlu0 %371
        %v373 = vcvt.f32.s32 %v372
        %v374 = vcvt.f32.s32 %v368
        %v375 = vshll.u32 %v374, 16
        %v376 = vadd.s32 %v375, %v373
        %vm377 = vcmp.eq.s32.totalorder %v355, %v376
        %v378 = vsel %vm377, -inf, %v351
        %v379 = vsel %vm356, %v378, -inf
        %380 = vmax.xlane.f32.xlu0 %v379
        %v381 = vpop.xlane.xlu0 %380
        %vm382 = vcmp.eq.f32.partialorder %v378, %v381
        %v383 = vsel %vm382, %v355, 8
        %v384 = vsel %vm356, %v383, 2147483647
        %v385 = vand.u32 %v384, 65535
        %v386 = vshra.s32 %v384, 16
        %v387 = vcvt.s32.f32 %v385
        %v388 = vcvt.s32.f32 %v386
        %389 = vmin.xlane.f32.xlu0 %v388
        %v390 = vpop.xlane.xlu0 %389
        %vm391 = vcmp.eq.f32.partialorder %v388, %v390
        %v392 = vsel %vm391, %v387, inf
        %393 = vmin.xlane.f32.xlu0 %v392
        %v394 = vpop.xlane.xlu0 %393
        %v395 = vcvt.f32.s32 %v394
        %v396 = vcvt.f32.s32 %v390
        %v397 = vshll.u32 %v396, 16
        %v398 = vadd.s32 %v397, %v395
        %vm399 = vcmp.eq.s32.totalorder %v355, %v398
        %v400 = vsel %vm399, -inf, %v378
        %v401 = vsel %vm356, %v400, -inf
        %402 = vmax.xlane.f32.xlu0 %v401
        %v403 = vpop.xlane.xlu0 %402
        %vm404 = vcmp.eq.f32.partialorder %v400, %v403
        %v405 = vsel %vm404, %v355, 8
        %v406 = vsel %vm356, %v405, 2147483647
        %v407 = vand.u32 %v406, 65535
        %v408 = vshra.s32 %v406, 16
        %v409 = vcvt.s32.f32 %v407
        %v410 = vcvt.s32.f32 %v408
        %411 = vmin.xlane.f32.xlu0 %v410
        %v412 = vpop.xlane.xlu0 %411
        %vm413 = vcmp.eq.f32.partialorder %v410, %v412
        %v414 = vsel %vm413, %v409, inf
        %415 = vmin.xlane.f32.xlu0 %v414
        %v416 = vpop.xlane.xlu0 %415
        %v417 = vcvt.f32.s32 %v416
        %v418 = vcvt.f32.s32 %v412
        %v419 = vshll.u32 %v418, 16
        %v420 = vadd.s32 %v419, %v417
        %vm421 = vcmp.eq.s32.totalorder %v355, %v420
        %v422 = vsel %vm421, -inf, %v400
        %v423 = vsel %vm356, %v422, -inf
        %424 = vmax.xlane.f32.xlu0 %v423
        %v425 = vpop.xlane.xlu0 %424
        %vm426 = vcmp.eq.f32.partialorder %v422, %v425
        %v427 = vsel %vm426, %v355, 8
        %v428 = vsel %vm356, %v427, 2147483647
        %v429 = vand.u32 %v428, 65535
        %v430 = vshra.s32 %v428, 16
        %v431 = vcvt.s32.f32 %v429
        %v432 = vcvt.s32.f32 %v430
        %433 = vmin.xlane.f32.xlu0 %v432
        %v434 = vpop.xlane.xlu0 %433
        %vm435 = vcmp.eq.f32.partialorder %v432, %v434
        %v436 = vsel %vm435, %v431, inf
        %437 = vmin.xlane.f32.xlu0 %v436
        %v438 = vpop.xlane.xlu0 %437
        %v439 = vcvt.f32.s32 %v438
        %v440 = vcvt.f32.s32 %v434
        %v441 = vshll.u32 %v440, 16
        %v442 = vadd.s32 %v441, %v439
        %vm443 = vcmp.eq.s32.totalorder %v355, %v442
        %v444 = vsel %vm443, -inf, %v422
        %vm445 = vcmp.eq.f32.partialorder %v444, -inf
        %v446 = vsub.f32 %v351, %v359
        %v447 = vmul.f32 %v446, 1.442695
        %v448 = vpow.pop %v447
        %v449 = vsel %vm445, %v448, 0.0
        %v450 = vsel %vm356, %v449, 0.0
        %451 = vadd.xlane.f32.xlu0 %v450
        %v452 = vpop.xlane.xlu0 %451
        %v454 = vsel %vm356, %v449, 0
        %456 = vmatprep.subr.mxu0 0.0
        %457 = vmatpush1.msra.mxu0 %v276
        %458 = vmatprep.subr.mxu0 0.0
        %459 = vmatpush1.msra.mxu0 0.0
        %460 = vmatprep.subr.mxu0 0.0
        %461 = vmatpush1.msra.mxu0 0.0
        %462 = vmatprep.subr.mxu0 0.0
        %463 = vmatpush1.msra.mxu0 0.0
        %464 = vmatprep.subr.mxu0 0.0
        %465 = vmatpush1.msra.mxu0 0.0
        %466 = vmatprep.subr.mxu0 0.0
        %467 = vmatpush1.msra.mxu0 0.0
        %468 = vmatprep.subr.mxu0 0.0
        %469 = vmatpush1.msra.mxu0 0.0
        %470 = vmatprep.subr.mxu0 0.0
        %471 = vmatpush1.msra.mxu0 0.0
        %472 = vmatprep.subr.mxu0 0.0
        %473 = vmatpush1.msra.mxu0 0.0
        %474 = vmatprep.subr.mxu0 0.0
        %475 = vmatpush1.msra.mxu0 0.0
        %476 = vmatprep.subr.mxu0 0.0
        %477 = vmatpush1.msra.mxu0 0.0
        %478 = vmatprep.subr.mxu0 0.0
        %479 = vmatpush1.msra.mxu0 0.0
        %480 = vmatprep.subr.mxu0 0.0
        %481 = vmatpush1.msra.mxu0 0.0
        %482 = vmatprep.subr.mxu0 0.0
        %483 = vmatpush1.msra.mxu0 0.0
        %484 = vmatprep.subr.mxu0 0.0
        %485 = vmatpush1.msra.mxu0 0.0
        %486 = vmatprep.subr.mxu0 0.0
        %487 = vmatpush1.msra.mxu0 0.0
        %488 = vmatprep.subr.mxu0 0.0
        %489 = vmatpush1.msra.mxu0 0.0
        %490 = vmatprep.subr.mxu0 0.0
        %491 = vmatpush1.msra.mxu0 0.0
        %492 = vmatprep.subr.mxu0 0.0
        %493 = vmatpush1.msra.mxu0 0.0
        %494 = vmatprep.subr.mxu0 0.0
        %495 = vmatpush1.msra.mxu0 0.0
        %496 = vmatprep.subr.mxu0 0.0
        %497 = vmatpush1.msra.mxu0 0.0
        %498 = vmatprep.subr.mxu0 0.0
        %499 = vmatpush1.msra.mxu0 0.0
        %500 = vmatprep.subr.mxu0 0.0
        %501 = vmatpush1.msra.mxu0 0.0
        %502 = vmatprep.subr.mxu0 0.0
        %503 = vmatpush1.msra.mxu0 0.0
        %504 = vmatprep.subr.mxu0 0.0
        %505 = vmatpush1.msra.mxu0 0.0
        %506 = vmatprep.subr.mxu0 0.0
        %507 = vmatpush1.msra.mxu0 0.0
        %508 = vmatprep.subr.mxu0 0.0
        %509 = vmatpush1.msra.mxu0 0.0
        %510 = vmatprep.subr.mxu0 0.0
        %511 = vmatpush1.msra.mxu0 0.0
        %512 = vmatprep.subr.mxu0 0.0
        %513 = vmatpush1.msra.mxu0 0.0
        %514 = vmatprep.subr.mxu0 0.0
        %515 = vmatpush1.msra.mxu0 0.0
        %516 = vmatprep.subr.mxu0 0.0
        %517 = vmatpush1.msra.mxu0 0.0
        %518 = vmatprep.subr.mxu0 0.0
        %519 = vmatpush1.msra.mxu0 0.0
        %520 = vmatprep.mubr.f32.mxu0 0.0
        %521 = vmatmul.mubr.f32.gmra.mrb[0].mxu0 %v454
        %v522 = vpop.f32.mrb[0].mxu0
        %v523 = vadd.f32 0.0, %v522
        %v524 = vpop.f32.mrb[0].mxu0
        %525 = vdwg.mxu0
        %v526 = vrcp.pop %v452
        %v527 = vmul.f32 1.0, %v526
        %v528 = vmul.f32 %v523, %v527
        %529 = vst.msk [vmem:[%s273] sm:$0xff] %vm277, %v528
        %s530 = sand.u32 %s125, 1
        %s531 = scalar_lea.sflag [#allocation4], %s530
        %s532 = sand.u32 %s125, 1
        %s533 = smul.addr %s532, 8
        %s534 = scalar_lea.vmem [#allocation8], %s533
        // Predicated region
        $region45: #{tpu_custom_call.1} parent=31 // pred_check
          %p535 = pneg %p135
        $region46: #{tpu_custom_call.1} parent=31 // pred_check_branch
          %537 = sbr.rel (%p535) target = $region48
        $region47: #{tpu_custom_call.1} parent=31 // pred_region
          %s539 = ssub.s32 128, 128
          %540 = vsyncadd %s531, %s539
          %s541 = sadd.s32 %s28, %s27
          %s542 = smul.addr %s541, 128
          %s543 = scalar_lea.hbm %s3, %s542
          %s545 = sshll.u32 %s534, 4
          %s546 = int_to_ptr.vmem [resolvable:$true] %s545
          %548 = dma.vmem_to_hbm [thread:$0]  %s546, 128, %s543, %s531
        $region48: #{tpu_custom_call.1} parent=31 // pred_fallthru
          _
      $region32: #{tpu_custom_call.1} parent=5 // pred_fallthru
        _
      %p549 = scmp.le.s32.totalorder 2, %s18
      // Predicated region
      $region49: #{tpu_custom_call.1} parent=5 // pred_check
        %p550 = pneg %p549
      $region50: #{tpu_custom_call.1} parent=5 // pred_check_branch
        %552 = sbr.rel (%p550) target = $region52
      $region51: #{tpu_custom_call.1} parent=5 // pred_region
        %s553 = ssub.s32 %s18, 2
        // Predicated region
        $region53: #{tpu_custom_call.1} parent=51 // pred_check
          %p554 = pneg %p141
        $region54: #{tpu_custom_call.1} parent=51 // pred_check_branch
          %556 = sbr.rel (%p554) target = $region56
        $region55: #{tpu_custom_call.1} parent=51 // pred_region
          %s557 = sand.u32 %s126, 1
          %s558 = scalar_lea.sflag [#allocation4], %s557
          %s559 = sand.u32 %s126, 1
          %s560 = smul.addr %s559, 8
          %s561 = scalar_lea.vmem [#allocation8], %s560
          %562 = dma.done %s558, 128
        $region56: #{tpu_custom_call.1} parent=51 // pred_fallthru
          _
      $region52: #{tpu_custom_call.1} parent=5 // pred_fallthru
        _
    $region6: #{tpu_custom_call.1} parent=1 // loop_footer
      %s22 = sadd.s32 1, %s18
    $region7: #{tpu_custom_call.1} parent=1 // loop_footer_branch
      %17 = sbr.rel target = $region3
    $region8: #{tpu_custom_call.1} parent=1 // loop_exit
      _
    %563 = vsyncpa [#allocation3], 1
    %s564 = scalar_lea.sflag [#allocation3], 1
    %565 = vsyncpa %s564, 1
    %566 = vsyncpa [#allocation6], 1
    %s567 = scalar_lea.sflag [#allocation6], 1
    %568 = vsyncpa %s567, 1
    %569 = vsyncpa [#allocation4], 1
    %s570 = scalar_lea.sflag [#allocation4], 1
    %571 = vsyncpa %s570, 1

</llo_original>
